<compile_context>
chip_gen: v7x
topology: tpu7x:2x2x1
jax: 0.10.0
libtpu: 0.0.40
codegen_flags: <defaults>
</compile_context>

<pallas_src>
import functools
import math

import jax
import jax.numpy as jnp
from jax.experimental import pallas as pl
from jax.experimental.pallas import tpu as pltpu


# ---------------------------------------------------------------------------
# Kernels
# ---------------------------------------------------------------------------
def _ln_rowwise_kernel(x_ref, o_ref, *, eps: float):
    """One logical row per block row; reduce over the lane axis (feats >= 128)."""
    x = x_ref[...].astype(jnp.float32)
    mean = jnp.mean(x, axis=-1, keepdims=True)
    c = x - mean                                   # reused for var and output
    var = jnp.mean(c * c, axis=-1, keepdims=True)  # population variance
    o_ref[...] = (c * jax.lax.rsqrt(var + eps)).astype(o_ref.dtype)


def _ln_packed_kernel(x_ref, seg_ref, o_ref, *, eps: float):
    """Lane-dense path for narrow feature widths.

    Each block row holds `group` logical rows of `feats` features packed into
    lanes = lcm(feats, 128) lanes.  `seg_ref` is a (lanes, lanes) block-diagonal
    matrix pre-scaled by 1/feats, resident across the grid (constant index_map),
    so segment means are one MXU matmul that also broadcasts the statistic back
    across each segment's lanes — no masked stores, no cross-lane shuffles.
    """
    x = x_ref[...].astype(jnp.float32)
    seg = seg_ref[...]
    mean = jnp.dot(x, seg, preferred_element_type=jnp.float32,
                   precision=jax.lax.Precision.HIGHEST)
    c = x - mean
    var = jnp.dot(c * c, seg, preferred_element_type=jnp.float32,
                  precision=jax.lax.Precision.HIGHEST)
    o_ref[...] = (c * jax.lax.rsqrt(var + eps)).astype(o_ref.dtype)


def _ln_stats_kernel(x_ref, stats_ref, *, eps: float, feats: int, tile_f: int):
    """Wide-feature pass 1: accumulate sum / sum-of-squares across feature blocks.

    Output block (tile_r, 2) is resident across the feature grid axis
    (accumulator); at the last feature block it is converted in place to
    (mean, rstd).  Note: E[x^2]-mean^2 trades a little cancellation accuracy
    for a single stats sweep over HBM (only used on the wide fallback path).
    """
    k = pl.program_id(1)

    @pl.when(k == 0)
    def _():
        stats_ref[...] = jnp.zeros_like(stats_ref)

    x = x_ref[...].astype(jnp.float32)
    # Mask the ragged feature tail so out-of-range lanes don't pollute the sums.
    col = k * tile_f + jax.lax.broadcasted_iota(jnp.int32, x.shape, 1)
    x = jnp.where(col < feats, x, 0.0)
    stats_ref[:, 0:1] += jnp.sum(x, axis=-1, keepdims=True)
    stats_ref[:, 1:2] += jnp.sum(x * x, axis=-1, keepdims=True)

    @pl.when(k == pl.num_programs(1) - 1)
    def _():
        inv = 1.0 / float(feats)
        mean = stats_ref[:, 0:1] * inv
        var = jnp.maximum(stats_ref[:, 1:2] * inv - mean * mean, 0.0)
        stats_ref[:, 0:1] = mean
        stats_ref[:, 1:2] = jax.lax.rsqrt(var + eps)


def _ln_wide_norm_kernel(x_ref, stats_ref, o_ref):
    """Wide-feature pass 2: normalize with precomputed (mean, rstd)."""
    x = x_ref[...].astype(jnp.float32)
    mean = stats_ref[:, 0:1]
    rstd = stats_ref[:, 1:2]
    o_ref[...] = ((x - mean) * rstd).astype(o_ref.dtype)


# ---------------------------------------------------------------------------
# Wrapper helpers
# ---------------------------------------------------------------------------
def _vmem_capacity_bytes() -> int:
    try:
        info = pltpu.get_tpu_info()
        cap = getattr(info, "vmem_capacity_bytes", None)
        if cap:
            return int(cap)
    except Exception:
        pass
    return 64 * 1024 * 1024  # conservative (v7x per-core physical VMEM)


def _round_down(v: int, m: int) -> int:
    return (v // m) * m


def _choose_row_tile(rows_t: int, lanes: int, itemsize: int, budget: int, pack: int) -> int:
    """Pick the row-tile size: VMEM-budget-bounded, ~4 MiB input blocks, and
    never a 1-step grid when there is enough work (pipelining / megacore)."""
    # Per tile-row cost: double-buffered input + double-buffered output (input
    # dtype) + ~2 live f32 temporaries (centered value + f32 upcast).  Loosened
    # from 3 temps so v7x's 32 MiB scoped VMEM still allows ~4 MiB blocks.
    per_row = lanes * (4 * itemsize + 2 * 4)
    tile = min(max(1, budget // per_row),
               max(1, (4 * 1024 * 1024) // max(1, lanes * itemsize)))
    tile = max(pack, _round_down(tile, pack))

    if rows_t >= 4 * pack:
        cap8 = max(pack, _round_down(rows_t // 8, pack))
        cap4 = max(pack, _round_down(rows_t // 4, pack))
        # Prefer >= 8 grid steps (keeps both v7x TensorCores fed with >= 4
        # blocks each and gives an even split) as long as blocks stay
        # >= ~512 KiB of input; otherwise settle for >= 4 steps.
        if rows_t >= 8 * pack and cap8 * lanes * itemsize >= 512 * 1024:
            tile = min(tile, cap8)
        else:
            tile = min(tile, cap4)

    if tile >= rows_t:
        tile = rows_t  # single full-extent block (always a legal block shape)
    return tile


# ---------------------------------------------------------------------------
# Public entry point
# ---------------------------------------------------------------------------
def layer_norm(x: jax.Array, normalized_shape, eps: float = 1e-5, *,
               _force_wide: bool = False) -> jax.Array:
    """Pallas LayerNorm matching the PyTorch module's forward (no affine)."""
    if isinstance(normalized_shape, int):
        normalized_shape = (normalized_shape,)
    normalized_shape = tuple(int(d) for d in normalized_shape)
    nd = len(normalized_shape)
    assert x.shape[x.ndim - nd:] == normalized_shape, (
        "trailing dims of x must equal normalized_shape")

    rows = math.prod(x.shape[: x.ndim - nd]) if x.ndim > nd else 1
    feats = math.prod(normalized_shape)
    if rows == 0 or feats == 0:
        return x

    itemsize = jnp.dtype(x.dtype).itemsize
    pack = max(8, 32 // itemsize)          # sublane packing: f32->8, bf16->16, int8->32

    vmem_cap = _vmem_capacity_bytes()                      # 128 MiB v5e/v6e, 64 MiB v7x
    vmem_limit = int(min(vmem_cap // 2, 96 * 1024 * 1024))  # scoped-VMEM limit we request
    budget = int(vmem_limit * 0.75)                          # headroom for compiler temps

    x_flat = x.reshape(rows, feats)

    # ---------------- lane-dense packed path (narrow features) --------------
    lanes_packed = (feats * 128) // math.gcd(feats, 128)   # lcm(feats, 128)
    use_packed = (not _force_wide) and (feats < 128) and (lanes_packed <= 512)
    if use_packed:
        group = lanes_packed // feats
        pad = (-rows) % group
        if pad:
            # Zero-padded rows have mean 0 / var 0 -> rsqrt(eps) stays finite.
            x_flat = jnp.pad(x_flat, ((0, pad), (0, 0)))
        rows_p = rows + pad
        rows_t, lanes = rows_p // group, lanes_packed
        x2 = x_flat.reshape(rows_t, lanes)

        ids = jnp.arange(lanes, dtype=jnp.int32) // feats
        seg = (ids[:, None] == ids[None, :]).astype(jnp.float32) * (1.0 / feats)
        seg_bytes = lanes * lanes * 4

        tile = _choose_row_tile(rows_t, lanes, itemsize, budget - 2 * seg_bytes, pack)
        grid = (pl.cdiv(rows_t, tile),)

        out2 = pl.pallas_call(
            functools.partial(_ln_packed_kernel, eps=float(eps)),
            out_shape=jax.ShapeDtypeStruct((rows_t, lanes), x.dtype),
            grid_spec=pltpu.PrefetchScalarGridSpec(
                num_scalar_prefetch=0,
                grid=grid,
                in_specs=[
                    pl.BlockSpec((tile, lanes), lambda i: (i, 0)),
                    pl.BlockSpec((lanes, lanes), lambda i: (0, 0)),  # resident seg
                ],
                out_specs=pl.BlockSpec((tile, lanes), lambda i: (i, 0)),
            ),
            compiler_params=pltpu.CompilerParams(
                dimension_semantics=("parallel",),
                vmem_limit_bytes=vmem_limit,
            ),
            cost_estimate=pl.CostEstimate(
                flops=int(5 * rows_p * feats + 4 * rows_t * lanes * lanes),
                transcendentals=int(rows_p),
                bytes_accessed=int(2 * rows_p * feats * itemsize + seg_bytes),
            ),
        )(x2, seg)
        out = out2.reshape(rows_p, feats)[:rows]
        return out.reshape(x.shape)

    # ---------------- row-wise path (full feature row per block) ------------
    per_row = feats * (4 * itemsize + 2 * 4)
    if (not _force_wide) and pack * per_row <= budget:
        rows_t, lanes = rows, feats
        tile = _choose_row_tile(rows_t, lanes, itemsize, budget, pack)
        grid = (pl.cdiv(rows_t, tile),)

        out2 = pl.pallas_call(
            functools.partial(_ln_rowwise_kernel, eps=float(eps)),
            out_shape=jax.ShapeDtypeStruct((rows_t, lanes), x.dtype),
            grid_spec=pltpu.PrefetchScalarGridSpec(
                num_scalar_prefetch=0,
                grid=grid,
                in_specs=[pl.BlockSpec((tile, lanes), lambda i: (i, 0))],
                out_specs=pl.BlockSpec((tile, lanes), lambda i: (i, 0)),
            ),
            compiler_params=pltpu.CompilerParams(
                dimension_semantics=("parallel",),
                vmem_limit_bytes=vmem_limit,
            ),
            cost_estimate=pl.CostEstimate(
                flops=int(7 * rows * feats),
                transcendentals=int(rows),
                bytes_accessed=int(2 * rows * feats * itemsize),
            ),
        )(x_flat)
        return out2.reshape(x.shape)

    # ---------------- feature-chunked (wide) path ----------------------------
    # Triggered when a single pack-row block with the full feature width would
    # exceed the scoped-VMEM budget (or when forced for testing).
    tile_r = min(pack, rows)
    per_elem = 2 * itemsize + 8          # dbl-buffered input + f32 temps
    tile_f = max(128, _round_down(budget // max(1, tile_r * per_elem), 128))
    tile_f = min(tile_f,
                 max(128, _round_down((4 * 1024 * 1024) // max(1, tile_r * itemsize), 128)))
    tile_f = min(tile_f, max(128, _round_down(feats, 128)))
    if _force_wide:
        tile_f = 128                     # small blocks so the accumulator is exercised
    n_r = pl.cdiv(rows, tile_r)
    n_f = pl.cdiv(feats, tile_f)

    stats = pl.pallas_call(
        functools.partial(_ln_stats_kernel, eps=float(eps), feats=feats, tile_f=tile_f),
        out_shape=jax.ShapeDtypeStruct((rows, 2), jnp.float32),
        grid_spec=pltpu.PrefetchScalarGridSpec(
            num_scalar_prefetch=0,
            grid=(n_r, n_f),
            in_specs=[pl.BlockSpec((tile_r, tile_f), lambda i, k: (i, k))],
            out_specs=pl.BlockSpec((tile_r, 2), lambda i, k: (i, 0)),  # accumulator
        ),
        compiler_params=pltpu.CompilerParams(
            dimension_semantics=("parallel", "arbitrary"),
            vmem_limit_bytes=vmem_limit,
        ),
    )(x_flat)

    out2 = pl.pallas_call(
        _ln_wide_norm_kernel,
        out_shape=jax.ShapeDtypeStruct((rows, feats), x.dtype),
        grid_spec=pltpu.PrefetchScalarGridSpec(
            num_scalar_prefetch=0,
            grid=(n_r, n_f),
            in_specs=[
                pl.BlockSpec((tile_r, tile_f), lambda i, k: (i, k)),
                pl.BlockSpec((tile_r, 2), lambda i, k: (i, 0)),
            ],
            out_specs=pl.BlockSpec((tile_r, tile_f), lambda i, k: (i, k)),
        ),
        compiler_params=pltpu.CompilerParams(
            dimension_semantics=("parallel", "arbitrary"),
            vmem_limit_bytes=vmem_limit,
        ),
    )(x_flat, stats)
    return out2.reshape(x.shape)


# ---------------------------------------------------------------------------
# Self-test
# ---------------------------------------------------------------------------
def _reference(x, eps):
    mean = jnp.mean(x, axis=-1, keepdims=True)
    var = jnp.mean((x - mean) ** 2, axis=-1, keepdims=True)
    return (x - mean) / jnp.sqrt(var + eps)


if __name__ == "__main__":
    key = jax.random.PRNGKey(0)
    eps = 1e-5
    k1, k2, k3, k4 = jax.random.split(key, 4)

    # 1) Narrow hidden (lane-dense packed path, feats divides 128).
    x1 = jax.random.normal(k1, (2, 8, 32), dtype=jnp.float32)
    y1 = jax.block_until_ready(layer_norm(x1, 32, eps=eps))
    assert jnp.allclose(y1, _reference(x1, eps), atol=1e-4, rtol=1e-4), "mismatch (packed)"

    # 2) hidden >= 128 (row-wise path, multi-step pipelined grid).
    x2 = jax.random.normal(k2, (4, 24, 256), dtype=jnp.float32)
    y2 = jax.block_until_ready(layer_norm(x2, 256, eps=eps))
    assert jnp.allclose(y2, _reference(x2, eps), atol=1e-5, rtol=1e-5), "mismatch (rowwise)"

    # 3) Non-divisor narrow width + row padding (feats=96 -> lanes=lcm(96,128)=384).
    x3 = jax.random.normal(k3, (5, 7, 96), dtype=jnp.float32)
    y3 = jax.block_until_ready(layer_norm(x3, 96, eps=eps))
    assert jnp.allclose(y3, _reference(x3, eps), atol=1e-4, rtol=1e-4), "mismatch (packed96)"

    # 4) bf16 input on the packed path.
    x4 = jax.random.normal(k4, (2, 8, 32), dtype=jnp.bfloat16)
    y4 = jax.block_until_ready(layer_norm(x4, 32, eps=eps))
    ref4 = _reference(x4.astype(jnp.float32), eps)
    assert jnp.allclose(y4.astype(jnp.float32), ref4, atol=3e-2, rtol=3e-2), "mismatch (bf16)"

    # 5) Feature-chunked wide path (forced, small feature blocks) — exercises
    #    the stats-accumulate + normalize two-pass fallback.
    y5 = jax.block_until_ready(layer_norm(x2, 256, eps=eps, _force_wide=True))
    assert jnp.allclose(y5, _reference(x2, eps), atol=1e-4, rtol=1e-4), "mismatch (wide)"

    print("KERNEL_OK")
</pallas_src>

<mosaic_0001>
module attributes {stable_mosaic.version = 11 : i64} {
  func.func @_ln_packed_kernel(%arg0: i32, %arg1: memref<4x128xf32, #tpu.memory_space<vmem>>, %arg2: memref<128x128xf32, #tpu.memory_space<vmem>>, %arg3: memref<4x128xf32, #tpu.memory_space<vmem>>) attributes {dimension_semantics = [#tpu.dimension_semantics<parallel>], iteration_bounds = array<i64: 1>, scalar_prefetch = 0 : i64, scratch_operands = 0 : i64, tpu.core_type = #tpu.core_type<tc>, window_params = [{transform_indices = @transform_0, window_bounds = array<i64: 4, 128>}, {pipeline_mode = #tpu.pipeline_mode<synchronous>, transform_indices = @transform_1, window_bounds = array<i64: 128, 128>}, {transform_indices = @transform_2, window_bounds = array<i64: 4, 128>}]} {
    %c0 = arith.constant 0 : index
    %c0_0 = arith.constant 0 : index
    %0 = vector.load %arg1[%c0, %c0_0] : memref<4x128xf32, #tpu.memory_space<vmem>>, vector<4x128xf32>
    %c0_1 = arith.constant 0 : index
    %c0_2 = arith.constant 0 : index
    %1 = vector.load %arg2[%c0_1, %c0_2] : memref<128x128xf32, #tpu.memory_space<vmem>>, vector<128x128xf32>
    %cst = arith.constant dense<0.000000e+00> : vector<4x128xf32>
    %2 = tpu.matmul %0, %1, %cst {dimension_numbers = #tpu.dot_dimension_numbers<[1], [0], [0], [1], [0, 0, 1, 1], [], []>, precision = #tpu.contract_precision<fp32>} : vector<4x128xf32>, vector<128x128xf32>, vector<4x128xf32> -> vector<4x128xf32>
    %3 = arith.subf %0, %2 : vector<4x128xf32>
    %4 = arith.mulf %3, %3 : vector<4x128xf32>
    %cst_3 = arith.constant dense<0.000000e+00> : vector<4x128xf32>
    %5 = tpu.matmul %4, %1, %cst_3 {dimension_numbers = #tpu.dot_dimension_numbers<[1], [0], [0], [1], [0, 0, 1, 1], [], []>, precision = #tpu.contract_precision<fp32>} : vector<4x128xf32>, vector<128x128xf32>, vector<4x128xf32> -> vector<4x128xf32>
    %cst_4 = arith.constant 9.99999974E-6 : f32
    %6 = vector.broadcast %cst_4 : f32 to vector<4x128xf32>
    %7 = arith.addf %5, %6 : vector<4x128xf32>
    %8 = math.rsqrt %7 : vector<4x128xf32>
    %9 = arith.mulf %3, %8 : vector<4x128xf32>
    %c0_5 = arith.constant 0 : index
    %c0_6 = arith.constant 0 : index
    %10 = vector.load %arg3[%c0_5, %c0_6] : memref<4x128xf32, #tpu.memory_space<vmem>>, vector<4x128xf32>
    tpu.vector_store %arg3[%c0_5, %c0_6], %9 {strides = array<i32>} : memref<4x128xf32, #tpu.memory_space<vmem>>, vector<4x128xf32>,
    return
  }
  func.func @transform_0(%arg0: i32) -> (i32, i32) {
    %c0_i32 = arith.constant 0 : i32
    %c0_i32_0 = arith.constant 0 : i32
    return %arg0, %c0_i32 : i32, i32
  }
  func.func @transform_1(%arg0: i32) -> (i32, i32) {
    %c0_i32 = arith.constant 0 : i32
    %c0_i32_0 = arith.constant 0 : i32
    %c0_i32_1 = arith.constant 0 : i32
    return %c0_i32, %c0_i32_0 : i32, i32
  }
  func.func @transform_2(%arg0: i32) -> (i32, i32) {
    %c0_i32 = arith.constant 0 : i32
    %c0_i32_0 = arith.constant 0 : i32
    return %arg0, %c0_i32 : i32, i32
  }
}

</mosaic_0001>

<llo_original>
// kernel: tpu_custom_call.1
$region0: #{tpu_custom_call.1}
  #allocation0 [shape = 'u32[]', space=smem, size = 0x4, offset = 0x4, fixed_abs, tag = 'smem constant byte address 0x4 - core index']
  #allocation1 [shape = 'u32[144,128]{1,0:T(1,128)}', space=vmem, size = 0x12000, scoped, tag = 'internal scratch']
  %s0 = inlined_call_operand.hbm [shape: f32[4,128], index: 0, kind: input, shape index: {}]
  %s1 = inlined_call_operand.hbm [shape: f32[128,128], index: 1, kind: input, shape index: {}]
  %s2 = inlined_call_operand.hbm [shape: f32[4,128], index: 2, kind: output, shape index: {}]
  %s3 = sld [smem:[#allocation0]]
  $region26: #{tpu_custom_call.1} parent=0
    _
  %s5 = ssub.s32 1, %s3
  %s6 = scalar_select 0, %s5, %s3
  $region1: #{tpu_custom_call.1} parent=0
    #allocation2 [shape = 'u8[2048]{0}', space=vmem, size = 0x800, scoped, tag = 'input window, operand 0, single buffered']
    #allocation3 [shape = 's32[1]{0}', space=sflag, size = 0x4, scoped, tag = 'scoped memory for tpu_custom_call.1']
    #allocation4 [shape = 's32[1]{0}', space=sflag, size = 0x4, scoped, tag = 'scoped memory for tpu_custom_call.1']
    #allocation5 [shape = 'u8[65536]{0}', space=vmem, size = 0x10000, scoped, tag = 'input window, operand 1, single buffered']
    #allocation6 [shape = 's32[1]{0}', space=sflag, size = 0x4, scoped, tag = 'scoped memory for tpu_custom_call.1']
    #allocation7 [shape = 'u8[2048]{0}', space=vmem, size = 0x800, scoped, tag = 'output window, operand 0, single buffered']
    %7 = vsyncpa [#allocation3], 0
    %8 = vsyncpa [#allocation6], 0
    %9 = vsyncpa [#allocation4], 0
    // Predicated region
    $region2: #{tpu_custom_call.1} parent=1 // pred_check
      _
    $region3: #{tpu_custom_call.1} parent=1 // pred_check_branch
      %11 = sbr.rel (0) target = $region5
    $region4: #{tpu_custom_call.1} parent=1 // pred_region
      %s13 = ssub.s32 64, 64
      %14 = vsyncadd [#allocation3], %s13
      %s16 = sshll.u32 [#allocation2], 4
      %s17 = int_to_ptr.vmem [resolvable:$true] %s16
      %19 = dma.hbm_to_vmem [thread:$0]  %s0, 64, %s17, [#allocation3]
    $region5: #{tpu_custom_call.1} parent=1 // pred_fallthru
      _
    // Predicated region
    $region6: #{tpu_custom_call.1} parent=1 // pred_check
      _
    $region7: #{tpu_custom_call.1} parent=1 // pred_check_branch
      %21 = sbr.rel (0) target = $region9
    $region8: #{tpu_custom_call.1} parent=1 // pred_region
      %s23 = ssub.s32 2048, 2048
      %24 = vsyncadd [#allocation6], %s23
      %s25 = sshll.u32 [#allocation5], 4
      %s26 = int_to_ptr.vmem [resolvable:$true] %s25
      %31 = dma.hbm_to_vmem [thread:$0]  %s1, 2048, %s26, [#allocation6], 128, 128, 8
    $region9: #{tpu_custom_call.1} parent=1 // pred_fallthru
      _
    // Predicated region
    $region10: #{tpu_custom_call.1} parent=1 // pred_check
      _
    $region11: #{tpu_custom_call.1} parent=1 // pred_check_branch
      %33 = sbr.rel (0) target = $region13
    $region12: #{tpu_custom_call.1} parent=1 // pred_region
      %34 = dma.done [#allocation3], 64
    $region13: #{tpu_custom_call.1} parent=1 // pred_fallthru
      _
    // Predicated region
    $region14: #{tpu_custom_call.1} parent=1 // pred_check
      _
    $region15: #{tpu_custom_call.1} parent=1 // pred_check_branch
      %36 = sbr.rel (0) target = $region17
    $region16: #{tpu_custom_call.1} parent=1 // pred_region
      %37 = dma.done [#allocation6], 2048
    $region17: #{tpu_custom_call.1} parent=1 // pred_fallthru
      _
    %v38 = vld [vmem:[#allocation2] sm:$0xf]
    %v39 = vld [vmem:[#allocation5] sm:$0xff]
    %v40 = vld [vmem:[#allocation5 + $0x8] sm:$0xff]
    %v41 = vld [vmem:[#allocation5 + $0x10] sm:$0xff]
    %v42 = vld [vmem:[#allocation5 + $0x18] sm:$0xff]
    %v43 = vld [vmem:[#allocation5 + $0x20] sm:$0xff]
    %v44 = vld [vmem:[#allocation5 + $0x28] sm:$0xff]
    %v45 = vld [vmem:[#allocation5 + $0x30] sm:$0xff]
    %v46 = vld [vmem:[#allocation5 + $0x38] sm:$0xff]
    %v47 = vld [vmem:[#allocation5 + $0x40] sm:$0xff]
    %v48 = vld [vmem:[#allocation5 + $0x48] sm:$0xff]
    %v49 = vld [vmem:[#allocation5 + $0x50] sm:$0xff]
    %v50 = vld [vmem:[#allocation5 + $0x58] sm:$0xff]
    %v51 = vld [vmem:[#allocation5 + $0x60] sm:$0xff]
    %v52 = vld [vmem:[#allocation5 + $0x68] sm:$0xff]
    %v53 = vld [vmem:[#allocation5 + $0x70] sm:$0xff]
    %v54 = vld [vmem:[#allocation5 + $0x78] sm:$0xff]
    %55 = vmatprep.subr.mxu0 0.0
    %v56 = vand.u32 %v39, 4294901760
    %57 = vmatpush1.msra.mxu0 %v56
    %58 = vmatprep.subr.mxu0 0.0
    %v59 = vand.u32 %v40, 4294901760
    %60 = vmatpush1.msra.mxu0 %v59
    %61 = vmatprep.subr.mxu0 0.0
    %v62 = vand.u32 %v41, 4294901760
    %63 = vmatpush1.msra.mxu0 %v62
    %64 = vmatprep.subr.mxu0 0.0
    %v65 = vand.u32 %v42, 4294901760
    %66 = vmatpush1.msra.mxu0 %v65
    %67 = vmatprep.subr.mxu0 0.0
    %v68 = vand.u32 %v43, 4294901760
    %69 = vmatpush1.msra.mxu0 %v68
    %70 = vmatprep.subr.mxu0 0.0
    %v71 = vand.u32 %v44, 4294901760
    %72 = vmatpush1.msra.mxu0 %v71
    %73 = vmatprep.subr.mxu0 0.0
    %v74 = vand.u32 %v45, 4294901760
    %75 = vmatpush1.msra.mxu0 %v74
    %76 = vmatprep.subr.mxu0 0.0
    %v77 = vand.u32 %v46, 4294901760
    %78 = vmatpush1.msra.mxu0 %v77
    %79 = vmatprep.subr.mxu0 0.0
    %v80 = vand.u32 %v47, 4294901760
    %81 = vmatpush1.msra.mxu0 %v80
    %82 = vmatprep.subr.mxu0 0.0
    %v83 = vand.u32 %v48, 4294901760
    %84 = vmatpush1.msra.mxu0 %v83
    %85 = vmatprep.subr.mxu0 0.0
    %v86 = vand.u32 %v49, 4294901760
    %87 = vmatpush1.msra.mxu0 %v86
    %88 = vmatprep.subr.mxu0 0.0
    %v89 = vand.u32 %v50, 4294901760
    %90 = vmatpush1.msra.mxu0 %v89
    %91 = vmatprep.subr.mxu0 0.0
    %v92 = vand.u32 %v51, 4294901760
    %93 = vmatpush1.msra.mxu0 %v92
    %94 = vmatprep.subr.mxu0 0.0
    %v95 = vand.u32 %v52, 4294901760
    %96 = vmatpush1.msra.mxu0 %v95
    %97 = vmatprep.subr.mxu0 0.0
    %v98 = vand.u32 %v53, 4294901760
    %99 = vmatpush1.msra.mxu0 %v98
    %100 = vmatprep.subr.mxu0 0.0
    %v101 = vand.u32 %v54, 4294901760
    %102 = vmatpush1.msra.mxu0 %v101
    %103 = vmatprep.subr.mxu0 0.0
    %104 = vmatpush1.msra.mxu0 0.0
    %105 = vmatprep.subr.mxu0 0.0
    %106 = vmatpush1.msra.mxu0 0.0
    %107 = vmatprep.subr.mxu0 0.0
    %108 = vmatpush1.msra.mxu0 0.0
    %109 = vmatprep.subr.mxu0 0.0
    %110 = vmatpush1.msra.mxu0 0.0
    %111 = vmatprep.subr.mxu0 0.0
    %112 = vmatpush1.msra.mxu0 0.0
    %113 = vmatprep.subr.mxu0 0.0
    %114 = vmatpush1.msra.mxu0 0.0
    %115 = vmatprep.subr.mxu0 0.0
    %116 = vmatpush1.msra.mxu0 0.0
    %117 = vmatprep.subr.mxu0 0.0
    %118 = vmatpush1.msra.mxu0 0.0
    %119 = vmatprep.subr.mxu0 0.0
    %120 = vmatpush1.msra.mxu0 0.0
    %121 = vmatprep.subr.mxu0 0.0
    %122 = vmatpush1.msra.mxu0 0.0
    %123 = vmatprep.subr.mxu0 0.0
    %124 = vmatpush1.msra.mxu0 0.0
    %125 = vmatprep.subr.mxu0 0.0
    %126 = vmatpush1.msra.mxu0 0.0
    %127 = vmatprep.subr.mxu0 0.0
    %128 = vmatpush1.msra.mxu0 0.0
    %129 = vmatprep.subr.mxu0 0.0
    %130 = vmatpush1.msra.mxu0 0.0
    %131 = vmatprep.subr.mxu0 0.0
    %132 = vmatpush1.msra.mxu0 0.0
    %133 = vmatprep.subr.mxu0 0.0
    %134 = vmatpush1.msra.mxu0 0.0
    %135 = vmatprep.mubr.f32.mxu0 0.0
    %v136 = vand.u32 %v38, 4294901760
    %v137 = vsub.f32 %v38, %v136
    %v138 = vand.u32 %v137, 4294901760
    %v139 = vsub.f32 %v137, %v138
    %v140 = vand.u32 %v139, 4294901760
    %141 = vmatmul.mubr.f32.gmra.mrb[0].mxu0 %v140
    %v142 = vpop.f32.mrb[0].mxu0
    %v143 = vadd.f32 0.0, %v142
    %v144 = vpop.f32.mrb[0].mxu0
    %145 = vdwg.mxu0
    %146 = vmatprep.subr.mxu0 0.0
    %v147 = vand.u32 %v39, 4294901760
    %v148 = vsub.f32 %v39, %v147
    %v149 = vand.u32 %v148, 4294901760
    %v150 = vsub.f32 %v148, %v149
    %v151 = vand.u32 %v150, 4294901760
    %152 = vmatpush1.msra.mxu0 %v151
    %153 = vmatprep.subr.mxu0 0.0
    %v154 = vand.u32 %v40, 4294901760
    %v155 = vsub.f32 %v40, %v154
    %v156 = vand.u32 %v155, 4294901760
    %v157 = vsub.f32 %v155, %v156
    %v158 = vand.u32 %v157, 4294901760
    %159 = vmatpush1.msra.mxu0 %v158
    %160 = vmatprep.subr.mxu0 0.0
    %v161 = vand.u32 %v41, 4294901760
    %v162 = vsub.f32 %v41, %v161
    %v163 = vand.u32 %v162, 4294901760
    %v164 = vsub.f32 %v162, %v163
    %v165 = vand.u32 %v164, 4294901760
    %166 = vmatpush1.msra.mxu0 %v165
    %167 = vmatprep.subr.mxu0 0.0
    %v168 = vand.u32 %v42, 4294901760
    %v169 = vsub.f32 %v42, %v168
    %v170 = vand.u32 %v169, 4294901760
    %v171 = vsub.f32 %v169, %v170
    %v172 = vand.u32 %v171, 4294901760
    %173 = vmatpush1.msra.mxu0 %v172
    %174 = vmatprep.subr.mxu0 0.0
    %v175 = vand.u32 %v43, 4294901760
    %v176 = vsub.f32 %v43, %v175
    %v177 = vand.u32 %v176, 4294901760
    %v178 = vsub.f32 %v176, %v177
    %v179 = vand.u32 %v178, 4294901760
    %180 = vmatpush1.msra.mxu0 %v179
    %181 = vmatprep.subr.mxu0 0.0
    %v182 = vand.u32 %v44, 4294901760
    %v183 = vsub.f32 %v44, %v182
    %v184 = vand.u32 %v183, 4294901760
    %v185 = vsub.f32 %v183, %v184
    %v186 = vand.u32 %v185, 4294901760
    %187 = vmatpush1.msra.mxu0 %v186
    %188 = vmatprep.subr.mxu0 0.0
    %v189 = vand.u32 %v45, 4294901760
    %v190 = vsub.f32 %v45, %v189
    %v191 = vand.u32 %v190, 4294901760
    %v192 = vsub.f32 %v190, %v191
    %v193 = vand.u32 %v192, 4294901760
    %194 = vmatpush1.msra.mxu0 %v193
    %195 = vmatprep.subr.mxu0 0.0
    %v196 = vand.u32 %v46, 4294901760
    %v197 = vsub.f32 %v46, %v196
    %v198 = vand.u32 %v197, 4294901760
    %v199 = vsub.f32 %v197, %v198
    %v200 = vand.u32 %v199, 4294901760
    %201 = vmatpush1.msra.mxu0 %v200
    %202 = vmatprep.subr.mxu0 0.0
    %v203 = vand.u32 %v47, 4294901760
    %v204 = vsub.f32 %v47, %v203
    %v205 = vand.u32 %v204, 4294901760
    %v206 = vsub.f32 %v204, %v205
    %v207 = vand.u32 %v206, 4294901760
    %208 = vmatpush1.msra.mxu0 %v207
    %209 = vmatprep.subr.mxu0 0.0
    %v210 = vand.u32 %v48, 4294901760
    %v211 = vsub.f32 %v48, %v210
    %v212 = vand.u32 %v211, 4294901760
    %v213 = vsub.f32 %v211, %v212
    %v214 = vand.u32 %v213, 4294901760
    %215 = vmatpush1.msra.mxu0 %v214
    %216 = vmatprep.subr.mxu0 0.0
    %v217 = vand.u32 %v49, 4294901760
    %v218 = vsub.f32 %v49, %v217
    %v219 = vand.u32 %v218, 4294901760
    %v220 = vsub.f32 %v218, %v219
    %v221 = vand.u32 %v220, 4294901760
    %222 = vmatpush1.msra.mxu0 %v221
    %223 = vmatprep.subr.mxu0 0.0
    %v224 = vand.u32 %v50, 4294901760
    %v225 = vsub.f32 %v50, %v224
    %v226 = vand.u32 %v225, 4294901760
    %v227 = vsub.f32 %v225, %v226
    %v228 = vand.u32 %v227, 4294901760
    %229 = vmatpush1.msra.mxu0 %v228
    %230 = vmatprep.subr.mxu0 0.0
    %v231 = vand.u32 %v51, 4294901760
    %v232 = vsub.f32 %v51, %v231
    %v233 = vand.u32 %v232, 4294901760
    %v234 = vsub.f32 %v232, %v233
    %v235 = vand.u32 %v234, 4294901760
    %236 = vmatpush1.msra.mxu0 %v235
    %237 = vmatprep.subr.mxu0 0.0
    %v238 = vand.u32 %v52, 4294901760
    %v239 = vsub.f32 %v52, %v238
    %v240 = vand.u32 %v239, 4294901760
    %v241 = vsub.f32 %v239, %v240
    %v242 = vand.u32 %v241, 4294901760
    %243 = vmatpush1.msra.mxu0 %v242
    %244 = vmatprep.subr.mxu0 0.0
    %v245 = vand.u32 %v53, 4294901760
    %v246 = vsub.f32 %v53, %v245
    %v247 = vand.u32 %v246, 4294901760
    %v248 = vsub.f32 %v246, %v247
    %v249 = vand.u32 %v248, 4294901760
    %250 = vmatpush1.msra.mxu0 %v249
    %251 = vmatprep.subr.mxu0 0.0
    %v252 = vand.u32 %v54, 4294901760
    %v253 = vsub.f32 %v54, %v252
    %v254 = vand.u32 %v253, 4294901760
    %v255 = vsub.f32 %v253, %v254
    %v256 = vand.u32 %v255, 4294901760
    %257 = vmatpush1.msra.mxu0 %v256
    %258 = vmatprep.subr.mxu0 0.0
    %259 = vmatpush1.msra.mxu0 0.0
    %260 = vmatprep.subr.mxu0 0.0
    %261 = vmatpush1.msra.mxu0 0.0
    %262 = vmatprep.subr.mxu0 0.0
    %263 = vmatpush1.msra.mxu0 0.0
    %264 = vmatprep.subr.mxu0 0.0
    %265 = vmatpush1.msra.mxu0 0.0
    %266 = vmatprep.subr.mxu0 0.0
    %267 = vmatpush1.msra.mxu0 0.0
    %268 = vmatprep.subr.mxu0 0.0
    %269 = vmatpush1.msra.mxu0 0.0
    %270 = vmatprep.subr.mxu0 0.0
    %271 = vmatpush1.msra.mxu0 0.0
    %272 = vmatprep.subr.mxu0 0.0
    %273 = vmatpush1.msra.mxu0 0.0
    %274 = vmatprep.subr.mxu0 0.0
    %275 = vmatpush1.msra.mxu0 0.0
    %276 = vmatprep.subr.mxu0 0.0
    %277 = vmatpush1.msra.mxu0 0.0
    %278 = vmatprep.subr.mxu0 0.0
    %279 = vmatpush1.msra.mxu0 0.0
    %280 = vmatprep.subr.mxu0 0.0
    %281 = vmatpush1.msra.mxu0 0.0
    %282 = vmatprep.subr.mxu0 0.0
    %283 = vmatpush1.msra.mxu0 0.0
    %284 = vmatprep.subr.mxu0 0.0
    %285 = vmatpush1.msra.mxu0 0.0
    %286 = vmatprep.subr.mxu0 0.0
    %287 = vmatpush1.msra.mxu0 0.0
    %288 = vmatprep.subr.mxu0 0.0
    %289 = vmatpush1.msra.mxu0 0.0
    %290 = vmatprep.mubr.f32.mxu0 0.0
    %v291 = vand.u32 %v38, 4294901760
    %292 = vmatmul.mubr.f32.gmra.mrb[0].mxu0 %v291
    %v293 = vpop.f32.mrb[0].mxu0
    %v294 = vadd.f32 %v143, %v293
    %v295 = vpop.f32.mrb[0].mxu0
    %296 = vdwg.mxu0
    %297 = vmatprep.subr.mxu0 0.0
    %v298 = vand.u32 %v39, 4294901760
    %v299 = vsub.f32 %v39, %v298
    %300 = vmatpush1.msra.mxu0 %v299
    %301 = vmatprep.subr.mxu0 0.0
    %v302 = vand.u32 %v40, 4294901760
    %v303 = vsub.f32 %v40, %v302
    %304 = vmatpush1.msra.mxu0 %v303
    %305 = vmatprep.subr.mxu0 0.0
    %v306 = vand.u32 %v41, 4294901760
    %v307 = vsub.f32 %v41, %v306
    %308 = vmatpush1.msra.mxu0 %v307
    %309 = vmatprep.subr.mxu0 0.0
    %v310 = vand.u32 %v42, 4294901760
    %v311 = vsub.f32 %v42, %v310
    %312 = vmatpush1.msra.mxu0 %v311
    %313 = vmatprep.subr.mxu0 0.0
    %v314 = vand.u32 %v43, 4294901760
    %v315 = vsub.f32 %v43, %v314
    %316 = vmatpush1.msra.mxu0 %v315
    %317 = vmatprep.subr.mxu0 0.0
    %v318 = vand.u32 %v44, 4294901760
    %v319 = vsub.f32 %v44, %v318
    %320 = vmatpush1.msra.mxu0 %v319
    %321 = vmatprep.subr.mxu0 0.0
    %v322 = vand.u32 %v45, 4294901760
    %v323 = vsub.f32 %v45, %v322
    %324 = vmatpush1.msra.mxu0 %v323
    %325 = vmatprep.subr.mxu0 0.0
    %v326 = vand.u32 %v46, 4294901760
    %v327 = vsub.f32 %v46, %v326
    %328 = vmatpush1.msra.mxu0 %v327
    %329 = vmatprep.subr.mxu0 0.0
    %v330 = vand.u32 %v47, 4294901760
    %v331 = vsub.f32 %v47, %v330
    %332 = vmatpush1.msra.mxu0 %v331
    %333 = vmatprep.subr.mxu0 0.0
    %v334 = vand.u32 %v48, 4294901760
    %v335 = vsub.f32 %v48, %v334
    %336 = vmatpush1.msra.mxu0 %v335
    %337 = vmatprep.subr.mxu0 0.0
    %v338 = vand.u32 %v49, 4294901760
    %v339 = vsub.f32 %v49, %v338
    %340 = vmatpush1.msra.mxu0 %v339
    %341 = vmatprep.subr.mxu0 0.0
    %v342 = vand.u32 %v50, 4294901760
    %v343 = vsub.f32 %v50, %v342
    %344 = vmatpush1.msra.mxu0 %v343
    %345 = vmatprep.subr.mxu0 0.0
    %v346 = vand.u32 %v51, 4294901760
    %v347 = vsub.f32 %v51, %v346
    %348 = vmatpush1.msra.mxu0 %v347
    %349 = vmatprep.subr.mxu0 0.0
    %v350 = vand.u32 %v52, 4294901760
    %v351 = vsub.f32 %v52, %v350
    %352 = vmatpush1.msra.mxu0 %v351
    %353 = vmatprep.subr.mxu0 0.0
    %v354 = vand.u32 %v53, 4294901760
    %v355 = vsub.f32 %v53, %v354
    %356 = vmatpush1.msra.mxu0 %v355
    %357 = vmatprep.subr.mxu0 0.0
    %v358 = vand.u32 %v54, 4294901760
    %v359 = vsub.f32 %v54, %v358
    %360 = vmatpush1.msra.mxu0 %v359
    %361 = vmatprep.subr.mxu0 0.0
    %362 = vmatpush1.msra.mxu0 0.0
    %363 = vmatprep.subr.mxu0 0.0
    %364 = vmatpush1.msra.mxu0 0.0
    %365 = vmatprep.subr.mxu0 0.0
    %366 = vmatpush1.msra.mxu0 0.0
    %367 = vmatprep.subr.mxu0 0.0
    %368 = vmatpush1.msra.mxu0 0.0
    %369 = vmatprep.subr.mxu0 0.0
    %370 = vmatpush1.msra.mxu0 0.0
    %371 = vmatprep.subr.mxu0 0.0
    %372 = vmatpush1.msra.mxu0 0.0
    %373 = vmatprep.subr.mxu0 0.0
    %374 = vmatpush1.msra.mxu0 0.0
    %375 = vmatprep.subr.mxu0 0.0
    %376 = vmatpush1.msra.mxu0 0.0
    %377 = vmatprep.subr.mxu0 0.0
    %378 = vmatpush1.msra.mxu0 0.0
    %379 = vmatprep.subr.mxu0 0.0
    %380 = vmatpush1.msra.mxu0 0.0
    %381 = vmatprep.subr.mxu0 0.0
    %382 = vmatpush1.msra.mxu0 0.0
    %383 = vmatprep.subr.mxu0 0.0
    %384 = vmatpush1.msra.mxu0 0.0
    %385 = vmatprep.subr.mxu0 0.0
    %386 = vmatpush1.msra.mxu0 0.0
    %387 = vmatprep.subr.mxu0 0.0
    %388 = vmatpush1.msra.mxu0 0.0
    %389 = vmatprep.subr.mxu0 0.0
    %390 = vmatpush1.msra.mxu0 0.0
    %391 = vmatprep.subr.mxu0 0.0
    %392 = vmatpush1.msra.mxu0 0.0
    %393 = vmatprep.mubr.f32.mxu0 0.0
    %v394 = vand.u32 %v38, 4294901760
    %v395 = vsub.f32 %v38, %v394
    %396 = vmatmul.mubr.f32.gmra.mrb[0].mxu0 %v395
    %v397 = vpop.f32.mrb[0].mxu0
    %v398 = vadd.f32 %v294, %v397
    %v399 = vpop.f32.mrb[0].mxu0
    %400 = vdwg.mxu0
    %401 = vmatprep.subr.mxu0 0.0
    %v402 = vand.u32 %v39, 4294901760
    %403 = vmatpush1.msra.mxu0 %v402
    %404 = vmatprep.subr.mxu0 0.0
    %v405 = vand.u32 %v40, 4294901760
    %406 = vmatpush1.msra.mxu0 %v405
    %407 = vmatprep.subr.mxu0 0.0
    %v408 = vand.u32 %v41, 4294901760
    %409 = vmatpush1.msra.mxu0 %v408
    %410 = vmatprep.subr.mxu0 0.0
    %v411 = vand.u32 %v42, 4294901760
    %412 = vmatpush1.msra.mxu0 %v411
    %413 = vmatprep.subr.mxu0 0.0
    %v414 = vand.u32 %v43, 4294901760
    %415 = vmatpush1.msra.mxu0 %v414
    %416 = vmatprep.subr.mxu0 0.0
    %v417 = vand.u32 %v44, 4294901760
    %418 = vmatpush1.msra.mxu0 %v417
    %419 = vmatprep.subr.mxu0 0.0
    %v420 = vand.u32 %v45, 4294901760
    %421 = vmatpush1.msra.mxu0 %v420
    %422 = vmatprep.subr.mxu0 0.0
    %v423 = vand.u32 %v46, 4294901760
    %424 = vmatpush1.msra.mxu0 %v423
    %425 = vmatprep.subr.mxu0 0.0
    %v426 = vand.u32 %v47, 4294901760
    %427 = vmatpush1.msra.mxu0 %v426
    %428 = vmatprep.subr.mxu0 0.0
    %v429 = vand.u32 %v48, 4294901760
    %430 = vmatpush1.msra.mxu0 %v429
    %431 = vmatprep.subr.mxu0 0.0
    %v432 = vand.u32 %v49, 4294901760
    %433 = vmatpush1.msra.mxu0 %v432
    %434 = vmatprep.subr.mxu0 0.0
    %v435 = vand.u32 %v50, 4294901760
    %436 = vmatpush1.msra.mxu0 %v435
    %437 = vmatprep.subr.mxu0 0.0
    %v438 = vand.u32 %v51, 4294901760
    %439 = vmatpush1.msra.mxu0 %v438
    %440 = vmatprep.subr.mxu0 0.0
    %v441 = vand.u32 %v52, 4294901760
    %442 = vmatpush1.msra.mxu0 %v441
    %443 = vmatprep.subr.mxu0 0.0
    %v444 = vand.u32 %v53, 4294901760
    %445 = vmatpush1.msra.mxu0 %v444
    %446 = vmatprep.subr.mxu0 0.0
    %v447 = vand.u32 %v54, 4294901760
    %448 = vmatpush1.msra.mxu0 %v447
    %449 = vmatprep.subr.mxu0 0.0
    %450 = vmatpush1.msra.mxu0 0.0
    %451 = vmatprep.subr.mxu0 0.0
    %452 = vmatpush1.msra.mxu0 0.0
    %453 = vmatprep.subr.mxu0 0.0
    %454 = vmatpush1.msra.mxu0 0.0
    %455 = vmatprep.subr.mxu0 0.0
    %456 = vmatpush1.msra.mxu0 0.0
    %457 = vmatprep.subr.mxu0 0.0
    %458 = vmatpush1.msra.mxu0 0.0
    %459 = vmatprep.subr.mxu0 0.0
    %460 = vmatpush1.msra.mxu0 0.0
    %461 = vmatprep.subr.mxu0 0.0
    %462 = vmatpush1.msra.mxu0 0.0
    %463 = vmatprep.subr.mxu0 0.0
    %464 = vmatpush1.msra.mxu0 0.0
    %465 = vmatprep.subr.mxu0 0.0
    %466 = vmatpush1.msra.mxu0 0.0
    %467 = vmatprep.subr.mxu0 0.0
    %468 = vmatpush1.msra.mxu0 0.0
    %469 = vmatprep.subr.mxu0 0.0
    %470 = vmatpush1.msra.mxu0 0.0
    %471 = vmatprep.subr.mxu0 0.0
    %472 = vmatpush1.msra.mxu0 0.0
    %473 = vmatprep.subr.mxu0 0.0
    %474 = vmatpush1.msra.mxu0 0.0
    %475 = vmatprep.subr.mxu0 0.0
    %476 = vmatpush1.msra.mxu0 0.0
    %477 = vmatprep.subr.mxu0 0.0
    %478 = vmatpush1.msra.mxu0 0.0
    %479 = vmatprep.subr.mxu0 0.0
    %480 = vmatpush1.msra.mxu0 0.0
    %481 = vmatprep.mubr.f32.mxu0 0.0
    %v482 = vand.u32 %v38, 4294901760
    %v483 = vsub.f32 %v38, %v482
    %v484 = vand.u32 %v483, 4294901760
    %485 = vmatmul.mubr.f32.gmra.mrb[0].mxu0 %v484
    %v486 = vpop.f32.mrb[0].mxu0
    %v487 = vadd.f32 %v398, %v486
    %v488 = vpop.f32.mrb[0].mxu0
    %489 = vdwg.mxu0
    %490 = vmatprep.subr.mxu0 0.0
    %v491 = vand.u32 %v39, 4294901760
    %v492 = vsub.f32 %v39, %v491
    %v493 = vand.u32 %v492, 4294901760
    %494 = vmatpush1.msra.mxu0 %v493
    %495 = vmatprep.subr.mxu0 0.0
    %v496 = vand.u32 %v40, 4294901760
    %v497 = vsub.f32 %v40, %v496
    %v498 = vand.u32 %v497, 4294901760
    %499 = vmatpush1.msra.mxu0 %v498
    %500 = vmatprep.subr.mxu0 0.0
    %v501 = vand.u32 %v41, 4294901760
    %v502 = vsub.f32 %v41, %v501
    %v503 = vand.u32 %v502, 4294901760
    %504 = vmatpush1.msra.mxu0 %v503
    %505 = vmatprep.subr.mxu0 0.0
    %v506 = vand.u32 %v42, 4294901760
    %v507 = vsub.f32 %v42, %v506
    %v508 = vand.u32 %v507, 4294901760
    %509 = vmatpush1.msra.mxu0 %v508
    %510 = vmatprep.subr.mxu0 0.0
    %v511 = vand.u32 %v43, 4294901760
    %v512 = vsub.f32 %v43, %v511
    %v513 = vand.u32 %v512, 4294901760
    %514 = vmatpush1.msra.mxu0 %v513
    %515 = vmatprep.subr.mxu0 0.0
    %v516 = vand.u32 %v44, 4294901760
    %v517 = vsub.f32 %v44, %v516
    %v518 = vand.u32 %v517, 4294901760
    %519 = vmatpush1.msra.mxu0 %v518
    %520 = vmatprep.subr.mxu0 0.0
    %v521 = vand.u32 %v45, 4294901760
    %v522 = vsub.f32 %v45, %v521
    %v523 = vand.u32 %v522, 4294901760
    %524 = vmatpush1.msra.mxu0 %v523
    %525 = vmatprep.subr.mxu0 0.0
    %v526 = vand.u32 %v46, 4294901760
    %v527 = vsub.f32 %v46, %v526
    %v528 = vand.u32 %v527, 4294901760
    %529 = vmatpush1.msra.mxu0 %v528
    %530 = vmatprep.subr.mxu0 0.0
    %v531 = vand.u32 %v47, 4294901760
    %v532 = vsub.f32 %v47, %v531
    %v533 = vand.u32 %v532, 4294901760
    %534 = vmatpush1.msra.mxu0 %v533
    %535 = vmatprep.subr.mxu0 0.0
    %v536 = vand.u32 %v48, 4294901760
    %v537 = vsub.f32 %v48, %v536
    %v538 = vand.u32 %v537, 4294901760
    %539 = vmatpush1.msra.mxu0 %v538
    %540 = vmatprep.subr.mxu0 0.0
    %v541 = vand.u32 %v49, 4294901760
    %v542 = vsub.f32 %v49, %v541
    %v543 = vand.u32 %v542, 4294901760
    %544 = vmatpush1.msra.mxu0 %v543
    %545 = vmatprep.subr.mxu0 0.0
    %v546 = vand.u32 %v50, 4294901760
    %v547 = vsub.f32 %v50, %v546
    %v548 = vand.u32 %v547, 4294901760
    %549 = vmatpush1.msra.mxu0 %v548
    %550 = vmatprep.subr.mxu0 0.0
    %v551 = vand.u32 %v51, 4294901760
    %v552 = vsub.f32 %v51, %v551
    %v553 = vand.u32 %v552, 4294901760
    %554 = vmatpush1.msra.mxu0 %v553
    %555 = vmatprep.subr.mxu0 0.0
    %v556 = vand.u32 %v52, 4294901760
    %v557 = vsub.f32 %v52, %v556
    %v558 = vand.u32 %v557, 4294901760
    %559 = vmatpush1.msra.mxu0 %v558
    %560 = vmatprep.subr.mxu0 0.0
    %v561 = vand.u32 %v53, 4294901760
    %v562 = vsub.f32 %v53, %v561
    %v563 = vand.u32 %v562, 4294901760
    %564 = vmatpush1.msra.mxu0 %v563
    %565 = vmatprep.subr.mxu0 0.0
    %v566 = vand.u32 %v54, 4294901760
    %v567 = vsub.f32 %v54, %v566
    %v568 = vand.u32 %v567, 4294901760
    %569 = vmatpush1.msra.mxu0 %v568
    %570 = vmatprep.subr.mxu0 0.0
    %571 = vmatpush1.msra.mxu0 0.0
    %572 = vmatprep.subr.mxu0 0.0
    %573 = vmatpush1.msra.mxu0 0.0
    %574 = vmatprep.subr.mxu0 0.0
    %575 = vmatpush1.msra.mxu0 0.0
    %576 = vmatprep.subr.mxu0 0.0
    %577 = vmatpush1.msra.mxu0 0.0
    %578 = vmatprep.subr.mxu0 0.0
    %579 = vmatpush1.msra.mxu0 0.0
    %580 = vmatprep.subr.mxu0 0.0
    %581 = vmatpush1.msra.mxu0 0.0
    %582 = vmatprep.subr.mxu0 0.0
    %583 = vmatpush1.msra.mxu0 0.0
    %584 = vmatprep.subr.mxu0 0.0
    %585 = vmatpush1.msra.mxu0 0.0
    %586 = vmatprep.subr.mxu0 0.0
    %587 = vmatpush1.msra.mxu0 0.0
    %588 = vmatprep.subr.mxu0 0.0
    %589 = vmatpush1.msra.mxu0 0.0
    %590 = vmatprep.subr.mxu0 0.0
    %591 = vmatpush1.msra.mxu0 0.0
    %592 = vmatprep.subr.mxu0 0.0
    %593 = vmatpush1.msra.mxu0 0.0
    %594 = vmatprep.subr.mxu0 0.0
    %595 = vmatpush1.msra.mxu0 0.0
    %596 = vmatprep.subr.mxu0 0.0
    %597 = vmatpush1.msra.mxu0 0.0
    %598 = vmatprep.subr.mxu0 0.0
    %599 = vmatpush1.msra.mxu0 0.0
    %600 = vmatprep.subr.mxu0 0.0
    %601 = vmatpush1.msra.mxu0 0.0
    %602 = vmatprep.mubr.f32.mxu0 0.0
    %v603 = vand.u32 %v38, 4294901760
    %604 = vmatmul.mubr.f32.gmra.mrb[0].mxu0 %v603
    %v605 = vpop.f32.mrb[0].mxu0
    %v606 = vadd.f32 %v487, %v605
    %v607 = vpop.f32.mrb[0].mxu0
    %608 = vdwg.mxu0
    %609 = vmatprep.subr.mxu0 0.0
    %v610 = vand.u32 %v39, 4294901760
    %611 = vmatpush1.msra.mxu0 %v610
    %612 = vmatprep.subr.mxu0 0.0
    %v613 = vand.u32 %v40, 4294901760
    %614 = vmatpush1.msra.mxu0 %v613
    %615 = vmatprep.subr.mxu0 0.0
    %v616 = vand.u32 %v41, 4294901760
    %617 = vmatpush1.msra.mxu0 %v616
    %618 = vmatprep.subr.mxu0 0.0
    %v619 = vand.u32 %v42, 4294901760
    %620 = vmatpush1.msra.mxu0 %v619
    %621 = vmatprep.subr.mxu0 0.0
    %v622 = vand.u32 %v43, 4294901760
    %623 = vmatpush1.msra.mxu0 %v622
    %624 = vmatprep.subr.mxu0 0.0
    %v625 = vand.u32 %v44, 4294901760
    %626 = vmatpush1.msra.mxu0 %v625
    %627 = vmatprep.subr.mxu0 0.0
    %v628 = vand.u32 %v45, 4294901760
    %629 = vmatpush1.msra.mxu0 %v628
    %630 = vmatprep.subr.mxu0 0.0
    %v631 = vand.u32 %v46, 4294901760
    %632 = vmatpush1.msra.mxu0 %v631
    %633 = vmatprep.subr.mxu0 0.0
    %v634 = vand.u32 %v47, 4294901760
    %635 = vmatpush1.msra.mxu0 %v634
    %636 = vmatprep.subr.mxu0 0.0
    %v637 = vand.u32 %v48, 4294901760
    %638 = vmatpush1.msra.mxu0 %v637
    %639 = vmatprep.subr.mxu0 0.0
    %v640 = vand.u32 %v49, 4294901760
    %641 = vmatpush1.msra.mxu0 %v640
    %642 = vmatprep.subr.mxu0 0.0
    %v643 = vand.u32 %v50, 4294901760
    %644 = vmatpush1.msra.mxu0 %v643
    %645 = vmatprep.subr.mxu0 0.0
    %v646 = vand.u32 %v51, 4294901760
    %647 = vmatpush1.msra.mxu0 %v646
    %648 = vmatprep.subr.mxu0 0.0
    %v649 = vand.u32 %v52, 4294901760
    %650 = vmatpush1.msra.mxu0 %v649
    %651 = vmatprep.subr.mxu0 0.0
    %v652 = vand.u32 %v53, 4294901760
    %653 = vmatpush1.msra.mxu0 %v652
    %654 = vmatprep.subr.mxu0 0.0
    %v655 = vand.u32 %v54, 4294901760
    %656 = vmatpush1.msra.mxu0 %v655
    %657 = vmatprep.subr.mxu0 0.0
    %658 = vmatpush1.msra.mxu0 0.0
    %659 = vmatprep.subr.mxu0 0.0
    %660 = vmatpush1.msra.mxu0 0.0
    %661 = vmatprep.subr.mxu0 0.0
    %662 = vmatpush1.msra.mxu0 0.0
    %663 = vmatprep.subr.mxu0 0.0
    %664 = vmatpush1.msra.mxu0 0.0
    %665 = vmatprep.subr.mxu0 0.0
    %666 = vmatpush1.msra.mxu0 0.0
    %667 = vmatprep.subr.mxu0 0.0
    %668 = vmatpush1.msra.mxu0 0.0
    %669 = vmatprep.subr.mxu0 0.0
    %670 = vmatpush1.msra.mxu0 0.0
    %671 = vmatprep.subr.mxu0 0.0
    %672 = vmatpush1.msra.mxu0 0.0
    %673 = vmatprep.subr.mxu0 0.0
    %674 = vmatpush1.msra.mxu0 0.0
    %675 = vmatprep.subr.mxu0 0.0
    %676 = vmatpush1.msra.mxu0 0.0
    %677 = vmatprep.subr.mxu0 0.0
    %678 = vmatpush1.msra.mxu0 0.0
    %679 = vmatprep.subr.mxu0 0.0
    %680 = vmatpush1.msra.mxu0 0.0
    %681 = vmatprep.subr.mxu0 0.0
    %682 = vmatpush1.msra.mxu0 0.0
    %683 = vmatprep.subr.mxu0 0.0
    %684 = vmatpush1.msra.mxu0 0.0
    %685 = vmatprep.subr.mxu0 0.0
    %686 = vmatpush1.msra.mxu0 0.0
    %687 = vmatprep.subr.mxu0 0.0
    %688 = vmatpush1.msra.mxu0 0.0
    %689 = vmatprep.mubr.f32.mxu0 0.0
    %v690 = vand.u32 %v38, 4294901760
    %691 = vmatmul.mubr.f32.gmra.mrb[0].mxu0 %v690
    %v692 = vpop.f32.mrb[0].mxu0
    %v693 = vadd.f32 %v606, %v692
    %v694 = vpop.f32.mrb[0].mxu0
    %695 = vdwg.mxu0
    %v696 = vsub.f32 %v38, %v693
    %v697 = vmul.f32 %v696, %v696
    %698 = vmatprep.subr.mxu0 0.0
    %v699 = vand.u32 %v39, 4294901760
    %700 = vmatpush1.msra.mxu0 %v699
    %701 = vmatprep.subr.mxu0 0.0
    %v702 = vand.u32 %v40, 4294901760
    %703 = vmatpush1.msra.mxu0 %v702
    %704 = vmatprep.subr.mxu0 0.0
    %v705 = vand.u32 %v41, 4294901760
    %706 = vmatpush1.msra.mxu0 %v705
    %707 = vmatprep.subr.mxu0 0.0
    %v708 = vand.u32 %v42, 4294901760
    %709 = vmatpush1.msra.mxu0 %v708
    %710 = vmatprep.subr.mxu0 0.0
    %v711 = vand.u32 %v43, 4294901760
    %712 = vmatpush1.msra.mxu0 %v711
    %713 = vmatprep.subr.mxu0 0.0
    %v714 = vand.u32 %v44, 4294901760
    %715 = vmatpush1.msra.mxu0 %v714
    %716 = vmatprep.subr.mxu0 0.0
    %v717 = vand.u32 %v45, 4294901760
    %718 = vmatpush1.msra.mxu0 %v717
    %719 = vmatprep.subr.mxu0 0.0
    %v720 = vand.u32 %v46, 4294901760
    %721 = vmatpush1.msra.mxu0 %v720
    %722 = vmatprep.subr.mxu0 0.0
    %v723 = vand.u32 %v47, 4294901760
    %724 = vmatpush1.msra.mxu0 %v723
    %725 = vmatprep.subr.mxu0 0.0
    %v726 = vand.u32 %v48, 4294901760
    %727 = vmatpush1.msra.mxu0 %v726
    %728 = vmatprep.subr.mxu0 0.0
    %v729 = vand.u32 %v49, 4294901760
    %730 = vmatpush1.msra.mxu0 %v729
    %731 = vmatprep.subr.mxu0 0.0
    %v732 = vand.u32 %v50, 4294901760
    %733 = vmatpush1.msra.mxu0 %v732
    %734 = vmatprep.subr.mxu0 0.0
    %v735 = vand.u32 %v51, 4294901760
    %736 = vmatpush1.msra.mxu0 %v735
    %737 = vmatprep.subr.mxu0 0.0
    %v738 = vand.u32 %v52, 4294901760
    %739 = vmatpush1.msra.mxu0 %v738
    %740 = vmatprep.subr.mxu0 0.0
    %v741 = vand.u32 %v53, 4294901760
    %742 = vmatpush1.msra.mxu0 %v741
    %743 = vmatprep.subr.mxu0 0.0
    %v744 = vand.u32 %v54, 4294901760
    %745 = vmatpush1.msra.mxu0 %v744
    %746 = vmatprep.subr.mxu0 0.0
    %747 = vmatpush1.msra.mxu0 0.0
    %748 = vmatprep.subr.mxu0 0.0
    %749 = vmatpush1.msra.mxu0 0.0
    %750 = vmatprep.subr.mxu0 0.0
    %751 = vmatpush1.msra.mxu0 0.0
    %752 = vmatprep.subr.mxu0 0.0
    %753 = vmatpush1.msra.mxu0 0.0
    %754 = vmatprep.subr.mxu0 0.0
    %755 = vmatpush1.msra.mxu0 0.0
    %756 = vmatprep.subr.mxu0 0.0
    %757 = vmatpush1.msra.mxu0 0.0
    %758 = vmatprep.subr.mxu0 0.0
    %759 = vmatpush1.msra.mxu0 0.0
    %760 = vmatprep.subr.mxu0 0.0
    %761 = vmatpush1.msra.mxu0 0.0
    %762 = vmatprep.subr.mxu0 0.0
    %763 = vmatpush1.msra.mxu0 0.0
    %764 = vmatprep.subr.mxu0 0.0
    %765 = vmatpush1.msra.mxu0 0.0
    %766 = vmatprep.subr.mxu0 0.0
    %767 = vmatpush1.msra.mxu0 0.0
    %768 = vmatprep.subr.mxu0 0.0
    %769 = vmatpush1.msra.mxu0 0.0
    %770 = vmatprep.subr.mxu0 0.0
    %771 = vmatpush1.msra.mxu0 0.0
    %772 = vmatprep.subr.mxu0 0.0
    %773 = vmatpush1.msra.mxu0 0.0
    %774 = vmatprep.subr.mxu0 0.0
    %775 = vmatpush1.msra.mxu0 0.0
    %776 = vmatprep.subr.mxu0 0.0
    %777 = vmatpush1.msra.mxu0 0.0
    %778 = vmatprep.mubr.f32.mxu0 0.0
    %v779 = vand.u32 %v697, 4294901760
    %v780 = vsub.f32 %v697, %v779
    %v781 = vand.u32 %v780, 4294901760
    %v782 = vsub.f32 %v780, %v781
    %v783 = vand.u32 %v782, 4294901760
    %784 = vmatmul.mubr.f32.gmra.mrb[0].mxu0 %v783
    %v785 = vpop.f32.mrb[0].mxu0
    %v786 = vadd.f32 1e-05, %v785
    %v787 = vpop.f32.mrb[0].mxu0
    %788 = vdwg.mxu0
    %789 = vmatprep.subr.mxu0 0.0
    %v790 = vand.u32 %v39, 4294901760
    %v791 = vsub.f32 %v39, %v790
    %v792 = vand.u32 %v791, 4294901760
    %v793 = vsub.f32 %v791, %v792
    %v794 = vand.u32 %v793, 4294901760
    %795 = vmatpush1.msra.mxu0 %v794
    %796 = vmatprep.subr.mxu0 0.0
    %v797 = vand.u32 %v40, 4294901760
    %v798 = vsub.f32 %v40, %v797
    %v799 = vand.u32 %v798, 4294901760
    %v800 = vsub.f32 %v798, %v799
    %v801 = vand.u32 %v800, 4294901760
    %802 = vmatpush1.msra.mxu0 %v801
    %803 = vmatprep.subr.mxu0 0.0
    %v804 = vand.u32 %v41, 4294901760
    %v805 = vsub.f32 %v41, %v804
    %v806 = vand.u32 %v805, 4294901760
    %v807 = vsub.f32 %v805, %v806
    %v808 = vand.u32 %v807, 4294901760
    %809 = vmatpush1.msra.mxu0 %v808
    %810 = vmatprep.subr.mxu0 0.0
    %v811 = vand.u32 %v42, 4294901760
    %v812 = vsub.f32 %v42, %v811
    %v813 = vand.u32 %v812, 4294901760
    %v814 = vsub.f32 %v812, %v813
    %v815 = vand.u32 %v814, 4294901760
    %816 = vmatpush1.msra.mxu0 %v815
    %817 = vmatprep.subr.mxu0 0.0
    %v818 = vand.u32 %v43, 4294901760
    %v819 = vsub.f32 %v43, %v818
    %v820 = vand.u32 %v819, 4294901760
    %v821 = vsub.f32 %v819, %v820
    %v822 = vand.u32 %v821, 4294901760
    %823 = vmatpush1.msra.mxu0 %v822
    %824 = vmatprep.subr.mxu0 0.0
    %v825 = vand.u32 %v44, 4294901760
    %v826 = vsub.f32 %v44, %v825
    %v827 = vand.u32 %v826, 4294901760
    %v828 = vsub.f32 %v826, %v827
    %v829 = vand.u32 %v828, 4294901760
    %830 = vmatpush1.msra.mxu0 %v829
    %831 = vmatprep.subr.mxu0 0.0
    %v832 = vand.u32 %v45, 4294901760
    %v833 = vsub.f32 %v45, %v832
    %v834 = vand.u32 %v833, 4294901760
    %v835 = vsub.f32 %v833, %v834
    %v836 = vand.u32 %v835, 4294901760
    %837 = vmatpush1.msra.mxu0 %v836
    %838 = vmatprep.subr.mxu0 0.0
    %v839 = vand.u32 %v46, 4294901760
    %v840 = vsub.f32 %v46, %v839
    %v841 = vand.u32 %v840, 4294901760
    %v842 = vsub.f32 %v840, %v841
    %v843 = vand.u32 %v842, 4294901760
    %844 = vmatpush1.msra.mxu0 %v843
    %845 = vmatprep.subr.mxu0 0.0
    %v846 = vand.u32 %v47, 4294901760
    %v847 = vsub.f32 %v47, %v846
    %v848 = vand.u32 %v847, 4294901760
    %v849 = vsub.f32 %v847, %v848
    %v850 = vand.u32 %v849, 4294901760
    %851 = vmatpush1.msra.mxu0 %v850
    %852 = vmatprep.subr.mxu0 0.0
    %v853 = vand.u32 %v48, 4294901760
    %v854 = vsub.f32 %v48, %v853
    %v855 = vand.u32 %v854, 4294901760
    %v856 = vsub.f32 %v854, %v855
    %v857 = vand.u32 %v856, 4294901760
    %858 = vmatpush1.msra.mxu0 %v857
    %859 = vmatprep.subr.mxu0 0.0
    %v860 = vand.u32 %v49, 4294901760
    %v861 = vsub.f32 %v49, %v860
    %v862 = vand.u32 %v861, 4294901760
    %v863 = vsub.f32 %v861, %v862
    %v864 = vand.u32 %v863, 4294901760
    %865 = vmatpush1.msra.mxu0 %v864
    %866 = vmatprep.subr.mxu0 0.0
    %v867 = vand.u32 %v50, 4294901760
    %v868 = vsub.f32 %v50, %v867
    %v869 = vand.u32 %v868, 4294901760
    %v870 = vsub.f32 %v868, %v869
    %v871 = vand.u32 %v870, 4294901760
    %872 = vmatpush1.msra.mxu0 %v871
    %873 = vmatprep.subr.mxu0 0.0
    %v874 = vand.u32 %v51, 4294901760
    %v875 = vsub.f32 %v51, %v874
    %v876 = vand.u32 %v875, 4294901760
    %v877 = vsub.f32 %v875, %v876
    %v878 = vand.u32 %v877, 4294901760
    %879 = vmatpush1.msra.mxu0 %v878
    %880 = vmatprep.subr.mxu0 0.0
    %v881 = vand.u32 %v52, 4294901760
    %v882 = vsub.f32 %v52, %v881
    %v883 = vand.u32 %v882, 4294901760
    %v884 = vsub.f32 %v882, %v883
    %v885 = vand.u32 %v884, 4294901760
    %886 = vmatpush1.msra.mxu0 %v885
    %887 = vmatprep.subr.mxu0 0.0
    %v888 = vand.u32 %v53, 4294901760
    %v889 = vsub.f32 %v53, %v888
    %v890 = vand.u32 %v889, 4294901760
    %v891 = vsub.f32 %v889, %v890
    %v892 = vand.u32 %v891, 4294901760
    %893 = vmatpush1.msra.mxu0 %v892
    %894 = vmatprep.subr.mxu0 0.0
    %v895 = vand.u32 %v54, 4294901760
    %v896 = vsub.f32 %v54, %v895
    %v897 = vand.u32 %v896, 4294901760
    %v898 = vsub.f32 %v896, %v897
    %v899 = vand.u32 %v898, 4294901760
    %900 = vmatpush1.msra.mxu0 %v899
    %901 = vmatprep.subr.mxu0 0.0
    %902 = vmatpush1.msra.mxu0 0.0
    %903 = vmatprep.subr.mxu0 0.0
    %904 = vmatpush1.msra.mxu0 0.0
    %905 = vmatprep.subr.mxu0 0.0
    %906 = vmatpush1.msra.mxu0 0.0
    %907 = vmatprep.subr.mxu0 0.0
    %908 = vmatpush1.msra.mxu0 0.0
    %909 = vmatprep.subr.mxu0 0.0
    %910 = vmatpush1.msra.mxu0 0.0
    %911 = vmatprep.subr.mxu0 0.0
    %912 = vmatpush1.msra.mxu0 0.0
    %913 = vmatprep.subr.mxu0 0.0
    %914 = vmatpush1.msra.mxu0 0.0
    %915 = vmatprep.subr.mxu0 0.0
    %916 = vmatpush1.msra.mxu0 0.0
    %917 = vmatprep.subr.mxu0 0.0
    %918 = vmatpush1.msra.mxu0 0.0
    %919 = vmatprep.subr.mxu0 0.0
    %920 = vmatpush1.msra.mxu0 0.0
    %921 = vmatprep.subr.mxu0 0.0
    %922 = vmatpush1.msra.mxu0 0.0
    %923 = vmatprep.subr.mxu0 0.0
    %924 = vmatpush1.msra.mxu0 0.0
    %925 = vmatprep.subr.mxu0 0.0
    %926 = vmatpush1.msra.mxu0 0.0
    %927 = vmatprep.subr.mxu0 0.0
    %928 = vmatpush1.msra.mxu0 0.0
    %929 = vmatprep.subr.mxu0 0.0
    %930 = vmatpush1.msra.mxu0 0.0
    %931 = vmatprep.subr.mxu0 0.0
    %932 = vmatpush1.msra.mxu0 0.0
    %933 = vmatprep.mubr.f32.mxu0 0.0
    %v934 = vand.u32 %v697, 4294901760
    %935 = vmatmul.mubr.f32.gmra.mrb[0].mxu0 %v934
    %v936 = vpop.f32.mrb[0].mxu0
    %v937 = vadd.f32 %v786, %v936
    %v938 = vpop.f32.mrb[0].mxu0
    %939 = vdwg.mxu0
    %940 = vmatprep.subr.mxu0 0.0
    %v941 = vand.u32 %v39, 4294901760
    %v942 = vsub.f32 %v39, %v941
    %943 = vmatpush1.msra.mxu0 %v942
    %944 = vmatprep.subr.mxu0 0.0
    %v945 = vand.u32 %v40, 4294901760
    %v946 = vsub.f32 %v40, %v945
    %947 = vmatpush1.msra.mxu0 %v946
    %948 = vmatprep.subr.mxu0 0.0
    %v949 = vand.u32 %v41, 4294901760
    %v950 = vsub.f32 %v41, %v949
    %951 = vmatpush1.msra.mxu0 %v950
    %952 = vmatprep.subr.mxu0 0.0
    %v953 = vand.u32 %v42, 4294901760
    %v954 = vsub.f32 %v42, %v953
    %955 = vmatpush1.msra.mxu0 %v954
    %956 = vmatprep.subr.mxu0 0.0
    %v957 = vand.u32 %v43, 4294901760
    %v958 = vsub.f32 %v43, %v957
    %959 = vmatpush1.msra.mxu0 %v958
    %960 = vmatprep.subr.mxu0 0.0
    %v961 = vand.u32 %v44, 4294901760
    %v962 = vsub.f32 %v44, %v961
    %963 = vmatpush1.msra.mxu0 %v962
    %964 = vmatprep.subr.mxu0 0.0
    %v965 = vand.u32 %v45, 4294901760
    %v966 = vsub.f32 %v45, %v965
    %967 = vmatpush1.msra.mxu0 %v966
    %968 = vmatprep.subr.mxu0 0.0
    %v969 = vand.u32 %v46, 4294901760
    %v970 = vsub.f32 %v46, %v969
    %971 = vmatpush1.msra.mxu0 %v970
    %972 = vmatprep.subr.mxu0 0.0
    %v973 = vand.u32 %v47, 4294901760
    %v974 = vsub.f32 %v47, %v973
    %975 = vmatpush1.msra.mxu0 %v974
    %976 = vmatprep.subr.mxu0 0.0
    %v977 = vand.u32 %v48, 4294901760
    %v978 = vsub.f32 %v48, %v977
    %979 = vmatpush1.msra.mxu0 %v978
    %980 = vmatprep.subr.mxu0 0.0
    %v981 = vand.u32 %v49, 4294901760
    %v982 = vsub.f32 %v49, %v981
    %983 = vmatpush1.msra.mxu0 %v982
    %984 = vmatprep.subr.mxu0 0.0
    %v985 = vand.u32 %v50, 4294901760
    %v986 = vsub.f32 %v50, %v985
    %987 = vmatpush1.msra.mxu0 %v986
    %988 = vmatprep.subr.mxu0 0.0
    %v989 = vand.u32 %v51, 4294901760
    %v990 = vsub.f32 %v51, %v989
    %991 = vmatpush1.msra.mxu0 %v990
    %992 = vmatprep.subr.mxu0 0.0
    %v993 = vand.u32 %v52, 4294901760
    %v994 = vsub.f32 %v52, %v993
    %995 = vmatpush1.msra.mxu0 %v994
    %996 = vmatprep.subr.mxu0 0.0
    %v997 = vand.u32 %v53, 4294901760
    %v998 = vsub.f32 %v53, %v997
    %999 = vmatpush1.msra.mxu0 %v998
    %1000 = vmatprep.subr.mxu0 0.0
    %v1001 = vand.u32 %v54, 4294901760
    %v1002 = vsub.f32 %v54, %v1001
    %1003 = vmatpush1.msra.mxu0 %v1002
    %1004 = vmatprep.subr.mxu0 0.0
    %1005 = vmatpush1.msra.mxu0 0.0
    %1006 = vmatprep.subr.mxu0 0.0
    %1007 = vmatpush1.msra.mxu0 0.0
    %1008 = vmatprep.subr.mxu0 0.0
    %1009 = vmatpush1.msra.mxu0 0.0
    %1010 = vmatprep.subr.mxu0 0.0
    %1011 = vmatpush1.msra.mxu0 0.0
    %1012 = vmatprep.subr.mxu0 0.0
    %1013 = vmatpush1.msra.mxu0 0.0
    %1014 = vmatprep.subr.mxu0 0.0
    %1015 = vmatpush1.msra.mxu0 0.0
    %1016 = vmatprep.subr.mxu0 0.0
    %1017 = vmatpush1.msra.mxu0 0.0
    %1018 = vmatprep.subr.mxu0 0.0
    %1019 = vmatpush1.msra.mxu0 0.0
    %1020 = vmatprep.subr.mxu0 0.0
    %1021 = vmatpush1.msra.mxu0 0.0
    %1022 = vmatprep.subr.mxu0 0.0
    %1023 = vmatpush1.msra.mxu0 0.0
    %1024 = vmatprep.subr.mxu0 0.0
    %1025 = vmatpush1.msra.mxu0 0.0
    %1026 = vmatprep.subr.mxu0 0.0
    %1027 = vmatpush1.msra.mxu0 0.0
    %1028 = vmatprep.subr.mxu0 0.0
    %1029 = vmatpush1.msra.mxu0 0.0
    %1030 = vmatprep.subr.mxu0 0.0
    %1031 = vmatpush1.msra.mxu0 0.0
    %1032 = vmatprep.subr.mxu0 0.0
    %1033 = vmatpush1.msra.mxu0 0.0
    %1034 = vmatprep.subr.mxu0 0.0
    %1035 = vmatpush1.msra.mxu0 0.0
    %1036 = vmatprep.mubr.f32.mxu0 0.0
    %v1037 = vand.u32 %v697, 4294901760
    %v1038 = vsub.f32 %v697, %v1037
    %1039 = vmatmul.mubr.f32.gmra.mrb[0].mxu0 %v1038
    %v1040 = vpop.f32.mrb[0].mxu0
    %v1041 = vadd.f32 %v937, %v1040
    %v1042 = vpop.f32.mrb[0].mxu0
    %1043 = vdwg.mxu0
    %1044 = vmatprep.subr.mxu0 0.0
    %v1045 = vand.u32 %v39, 4294901760
    %1046 = vmatpush1.msra.mxu0 %v1045
    %1047 = vmatprep.subr.mxu0 0.0
    %v1048 = vand.u32 %v40, 4294901760
    %1049 = vmatpush1.msra.mxu0 %v1048
    %1050 = vmatprep.subr.mxu0 0.0
    %v1051 = vand.u32 %v41, 4294901760
    %1052 = vmatpush1.msra.mxu0 %v1051
    %1053 = vmatprep.subr.mxu0 0.0
    %v1054 = vand.u32 %v42, 4294901760
    %1055 = vmatpush1.msra.mxu0 %v1054
    %1056 = vmatprep.subr.mxu0 0.0
    %v1057 = vand.u32 %v43, 4294901760
    %1058 = vmatpush1.msra.mxu0 %v1057
    %1059 = vmatprep.subr.mxu0 0.0
    %v1060 = vand.u32 %v44, 4294901760
    %1061 = vmatpush1.msra.mxu0 %v1060
    %1062 = vmatprep.subr.mxu0 0.0
    %v1063 = vand.u32 %v45, 4294901760
    %1064 = vmatpush1.msra.mxu0 %v1063
    %1065 = vmatprep.subr.mxu0 0.0
    %v1066 = vand.u32 %v46, 4294901760
    %1067 = vmatpush1.msra.mxu0 %v1066
    %1068 = vmatprep.subr.mxu0 0.0
    %v1069 = vand.u32 %v47, 4294901760
    %1070 = vmatpush1.msra.mxu0 %v1069
    %1071 = vmatprep.subr.mxu0 0.0
    %v1072 = vand.u32 %v48, 4294901760
    %1073 = vmatpush1.msra.mxu0 %v1072
    %1074 = vmatprep.subr.mxu0 0.0
    %v1075 = vand.u32 %v49, 4294901760
    %1076 = vmatpush1.msra.mxu0 %v1075
    %1077 = vmatprep.subr.mxu0 0.0
    %v1078 = vand.u32 %v50, 4294901760
    %1079 = vmatpush1.msra.mxu0 %v1078
    %1080 = vmatprep.subr.mxu0 0.0
    %v1081 = vand.u32 %v51, 4294901760
    %1082 = vmatpush1.msra.mxu0 %v1081
    %1083 = vmatprep.subr.mxu0 0.0
    %v1084 = vand.u32 %v52, 4294901760
    %1085 = vmatpush1.msra.mxu0 %v1084
    %1086 = vmatprep.subr.mxu0 0.0
    %v1087 = vand.u32 %v53, 4294901760
    %1088 = vmatpush1.msra.mxu0 %v1087
    %1089 = vmatprep.subr.mxu0 0.0
    %v1090 = vand.u32 %v54, 4294901760
    %1091 = vmatpush1.msra.mxu0 %v1090
    %1092 = vmatprep.subr.mxu0 0.0
    %1093 = vmatpush1.msra.mxu0 0.0
    %1094 = vmatprep.subr.mxu0 0.0
    %1095 = vmatpush1.msra.mxu0 0.0
    %1096 = vmatprep.subr.mxu0 0.0
    %1097 = vmatpush1.msra.mxu0 0.0
    %1098 = vmatprep.subr.mxu0 0.0
    %1099 = vmatpush1.msra.mxu0 0.0
    %1100 = vmatprep.subr.mxu0 0.0
    %1101 = vmatpush1.msra.mxu0 0.0
    %1102 = vmatprep.subr.mxu0 0.0
    %1103 = vmatpush1.msra.mxu0 0.0
    %1104 = vmatprep.subr.mxu0 0.0
    %1105 = vmatpush1.msra.mxu0 0.0
    %1106 = vmatprep.subr.mxu0 0.0
    %1107 = vmatpush1.msra.mxu0 0.0
    %1108 = vmatprep.subr.mxu0 0.0
    %1109 = vmatpush1.msra.mxu0 0.0
    %1110 = vmatprep.subr.mxu0 0.0
    %1111 = vmatpush1.msra.mxu0 0.0
    %1112 = vmatprep.subr.mxu0 0.0
    %1113 = vmatpush1.msra.mxu0 0.0
    %1114 = vmatprep.subr.mxu0 0.0
    %1115 = vmatpush1.msra.mxu0 0.0
    %1116 = vmatprep.subr.mxu0 0.0
    %1117 = vmatpush1.msra.mxu0 0.0
    %1118 = vmatprep.subr.mxu0 0.0
    %1119 = vmatpush1.msra.mxu0 0.0
    %1120 = vmatprep.subr.mxu0 0.0
    %1121 = vmatpush1.msra.mxu0 0.0
    %1122 = vmatprep.subr.mxu0 0.0
    %1123 = vmatpush1.msra.mxu0 0.0
    %1124 = vmatprep.mubr.f32.mxu0 0.0
    %v1125 = vand.u32 %v697, 4294901760
    %v1126 = vsub.f32 %v697, %v1125
    %v1127 = vand.u32 %v1126, 4294901760
    %1128 = vmatmul.mubr.f32.gmra.mrb[0].mxu0 %v1127
    %v1129 = vpop.f32.mrb[0].mxu0
    %v1130 = vadd.f32 %v1041, %v1129
    %v1131 = vpop.f32.mrb[0].mxu0
    %1132 = vdwg.mxu0
    %1133 = vmatprep.subr.mxu0 0.0
    %v1134 = vand.u32 %v39, 4294901760
    %v1135 = vsub.f32 %v39, %v1134
    %v1136 = vand.u32 %v1135, 4294901760
    %1137 = vmatpush1.msra.mxu0 %v1136
    %1138 = vmatprep.subr.mxu0 0.0
    %v1139 = vand.u32 %v40, 4294901760
    %v1140 = vsub.f32 %v40, %v1139
    %v1141 = vand.u32 %v1140, 4294901760
    %1142 = vmatpush1.msra.mxu0 %v1141
    %1143 = vmatprep.subr.mxu0 0.0
    %v1144 = vand.u32 %v41, 4294901760
    %v1145 = vsub.f32 %v41, %v1144
    %v1146 = vand.u32 %v1145, 4294901760
    %1147 = vmatpush1.msra.mxu0 %v1146
    %1148 = vmatprep.subr.mxu0 0.0
    %v1149 = vand.u32 %v42, 4294901760
    %v1150 = vsub.f32 %v42, %v1149
    %v1151 = vand.u32 %v1150, 4294901760
    %1152 = vmatpush1.msra.mxu0 %v1151
    %1153 = vmatprep.subr.mxu0 0.0
    %v1154 = vand.u32 %v43, 4294901760
    %v1155 = vsub.f32 %v43, %v1154
    %v1156 = vand.u32 %v1155, 4294901760
    %1157 = vmatpush1.msra.mxu0 %v1156
    %1158 = vmatprep.subr.mxu0 0.0
    %v1159 = vand.u32 %v44, 4294901760
    %v1160 = vsub.f32 %v44, %v1159
    %v1161 = vand.u32 %v1160, 4294901760
    %1162 = vmatpush1.msra.mxu0 %v1161
    %1163 = vmatprep.subr.mxu0 0.0
    %v1164 = vand.u32 %v45, 4294901760
    %v1165 = vsub.f32 %v45, %v1164
    %v1166 = vand.u32 %v1165, 4294901760
    %1167 = vmatpush1.msra.mxu0 %v1166
    %1168 = vmatprep.subr.mxu0 0.0
    %v1169 = vand.u32 %v46, 4294901760
    %v1170 = vsub.f32 %v46, %v1169
    %v1171 = vand.u32 %v1170, 4294901760
    %1172 = vmatpush1.msra.mxu0 %v1171
    %1173 = vmatprep.subr.mxu0 0.0
    %v1174 = vand.u32 %v47, 4294901760
    %v1175 = vsub.f32 %v47, %v1174
    %v1176 = vand.u32 %v1175, 4294901760
    %1177 = vmatpush1.msra.mxu0 %v1176
    %1178 = vmatprep.subr.mxu0 0.0
    %v1179 = vand.u32 %v48, 4294901760
    %v1180 = vsub.f32 %v48, %v1179
    %v1181 = vand.u32 %v1180, 4294901760
    %1182 = vmatpush1.msra.mxu0 %v1181
    %1183 = vmatprep.subr.mxu0 0.0
    %v1184 = vand.u32 %v49, 4294901760
    %v1185 = vsub.f32 %v49, %v1184
    %v1186 = vand.u32 %v1185, 4294901760
    %1187 = vmatpush1.msra.mxu0 %v1186
    %1188 = vmatprep.subr.mxu0 0.0
    %v1189 = vand.u32 %v50, 4294901760
    %v1190 = vsub.f32 %v50, %v1189
    %v1191 = vand.u32 %v1190, 4294901760
    %1192 = vmatpush1.msra.mxu0 %v1191
    %1193 = vmatprep.subr.mxu0 0.0
    %v1194 = vand.u32 %v51, 4294901760
    %v1195 = vsub.f32 %v51, %v1194
    %v1196 = vand.u32 %v1195, 4294901760
    %1197 = vmatpush1.msra.mxu0 %v1196
    %1198 = vmatprep.subr.mxu0 0.0
    %v1199 = vand.u32 %v52, 4294901760
    %v1200 = vsub.f32 %v52, %v1199
    %v1201 = vand.u32 %v1200, 4294901760
    %1202 = vmatpush1.msra.mxu0 %v1201
    %1203 = vmatprep.subr.mxu0 0.0
    %v1204 = vand.u32 %v53, 4294901760
    %v1205 = vsub.f32 %v53, %v1204
    %v1206 = vand.u32 %v1205, 4294901760
    %1207 = vmatpush1.msra.mxu0 %v1206
    %1208 = vmatprep.subr.mxu0 0.0
    %v1209 = vand.u32 %v54, 4294901760
    %v1210 = vsub.f32 %v54, %v1209
    %v1211 = vand.u32 %v1210, 4294901760
    %1212 = vmatpush1.msra.mxu0 %v1211
    %1213 = vmatprep.subr.mxu0 0.0
    %1214 = vmatpush1.msra.mxu0 0.0
    %1215 = vmatprep.subr.mxu0 0.0
    %1216 = vmatpush1.msra.mxu0 0.0
    %1217 = vmatprep.subr.mxu0 0.0
    %1218 = vmatpush1.msra.mxu0 0.0
    %1219 = vmatprep.subr.mxu0 0.0
    %1220 = vmatpush1.msra.mxu0 0.0
    %1221 = vmatprep.subr.mxu0 0.0
    %1222 = vmatpush1.msra.mxu0 0.0
    %1223 = vmatprep.subr.mxu0 0.0
    %1224 = vmatpush1.msra.mxu0 0.0
    %1225 = vmatprep.subr.mxu0 0.0
    %1226 = vmatpush1.msra.mxu0 0.0
    %1227 = vmatprep.subr.mxu0 0.0
    %1228 = vmatpush1.msra.mxu0 0.0
    %1229 = vmatprep.subr.mxu0 0.0
    %1230 = vmatpush1.msra.mxu0 0.0
    %1231 = vmatprep.subr.mxu0 0.0
    %1232 = vmatpush1.msra.mxu0 0.0
    %1233 = vmatprep.subr.mxu0 0.0
    %1234 = vmatpush1.msra.mxu0 0.0
    %1235 = vmatprep.subr.mxu0 0.0
    %1236 = vmatpush1.msra.mxu0 0.0
    %1237 = vmatprep.subr.mxu0 0.0
    %1238 = vmatpush1.msra.mxu0 0.0
    %1239 = vmatprep.subr.mxu0 0.0
    %1240 = vmatpush1.msra.mxu0 0.0
    %1241 = vmatprep.subr.mxu0 0.0
    %1242 = vmatpush1.msra.mxu0 0.0
    %1243 = vmatprep.subr.mxu0 0.0
    %1244 = vmatpush1.msra.mxu0 0.0
    %1245 = vmatprep.mubr.f32.mxu0 0.0
    %v1246 = vand.u32 %v697, 4294901760
    %1247 = vmatmul.mubr.f32.gmra.mrb[0].mxu0 %v1246
    %v1248 = vpop.f32.mrb[0].mxu0
    %v1249 = vadd.f32 %v1130, %v1248
    %v1250 = vpop.f32.mrb[0].mxu0
    %1251 = vdwg.mxu0
    %1252 = vmatprep.subr.mxu0 0.0
    %v1253 = vand.u32 %v39, 4294901760
    %1254 = vmatpush1.msra.mxu0 %v1253
    %1255 = vmatprep.subr.mxu0 0.0
    %v1256 = vand.u32 %v40, 4294901760
    %1257 = vmatpush1.msra.mxu0 %v1256
    %1258 = vmatprep.subr.mxu0 0.0
    %v1259 = vand.u32 %v41, 4294901760
    %1260 = vmatpush1.msra.mxu0 %v1259
    %1261 = vmatprep.subr.mxu0 0.0
    %v1262 = vand.u32 %v42, 4294901760
    %1263 = vmatpush1.msra.mxu0 %v1262
    %1264 = vmatprep.subr.mxu0 0.0
    %v1265 = vand.u32 %v43, 4294901760
    %1266 = vmatpush1.msra.mxu0 %v1265
    %1267 = vmatprep.subr.mxu0 0.0
    %v1268 = vand.u32 %v44, 4294901760
    %1269 = vmatpush1.msra.mxu0 %v1268
    %1270 = vmatprep.subr.mxu0 0.0
    %v1271 = vand.u32 %v45, 4294901760
    %1272 = vmatpush1.msra.mxu0 %v1271
    %1273 = vmatprep.subr.mxu0 0.0
    %v1274 = vand.u32 %v46, 4294901760
    %1275 = vmatpush1.msra.mxu0 %v1274
    %1276 = vmatprep.subr.mxu0 0.0
    %v1277 = vand.u32 %v47, 4294901760
    %1278 = vmatpush1.msra.mxu0 %v1277
    %1279 = vmatprep.subr.mxu0 0.0
    %v1280 = vand.u32 %v48, 4294901760
    %1281 = vmatpush1.msra.mxu0 %v1280
    %1282 = vmatprep.subr.mxu0 0.0
    %v1283 = vand.u32 %v49, 4294901760
    %1284 = vmatpush1.msra.mxu0 %v1283
    %1285 = vmatprep.subr.mxu0 0.0
    %v1286 = vand.u32 %v50, 4294901760
    %1287 = vmatpush1.msra.mxu0 %v1286
    %1288 = vmatprep.subr.mxu0 0.0
    %v1289 = vand.u32 %v51, 4294901760
    %1290 = vmatpush1.msra.mxu0 %v1289
    %1291 = vmatprep.subr.mxu0 0.0
    %v1292 = vand.u32 %v52, 4294901760
    %1293 = vmatpush1.msra.mxu0 %v1292
    %1294 = vmatprep.subr.mxu0 0.0
    %v1295 = vand.u32 %v53, 4294901760
    %1296 = vmatpush1.msra.mxu0 %v1295
    %1297 = vmatprep.subr.mxu0 0.0
    %v1298 = vand.u32 %v54, 4294901760
    %1299 = vmatpush1.msra.mxu0 %v1298
    %1300 = vmatprep.subr.mxu0 0.0
    %1301 = vmatpush1.msra.mxu0 0.0
    %1302 = vmatprep.subr.mxu0 0.0
    %1303 = vmatpush1.msra.mxu0 0.0
    %1304 = vmatprep.subr.mxu0 0.0
    %1305 = vmatpush1.msra.mxu0 0.0
    %1306 = vmatprep.subr.mxu0 0.0
    %1307 = vmatpush1.msra.mxu0 0.0
    %1308 = vmatprep.subr.mxu0 0.0
    %1309 = vmatpush1.msra.mxu0 0.0
    %1310 = vmatprep.subr.mxu0 0.0
    %1311 = vmatpush1.msra.mxu0 0.0
    %1312 = vmatprep.subr.mxu0 0.0
    %1313 = vmatpush1.msra.mxu0 0.0
    %1314 = vmatprep.subr.mxu0 0.0
    %1315 = vmatpush1.msra.mxu0 0.0
    %1316 = vmatprep.subr.mxu0 0.0
    %1317 = vmatpush1.msra.mxu0 0.0
    %1318 = vmatprep.subr.mxu0 0.0
    %1319 = vmatpush1.msra.mxu0 0.0
    %1320 = vmatprep.subr.mxu0 0.0
    %1321 = vmatpush1.msra.mxu0 0.0
    %1322 = vmatprep.subr.mxu0 0.0
    %1323 = vmatpush1.msra.mxu0 0.0
    %1324 = vmatprep.subr.mxu0 0.0
    %1325 = vmatpush1.msra.mxu0 0.0
    %1326 = vmatprep.subr.mxu0 0.0
    %1327 = vmatpush1.msra.mxu0 0.0
    %1328 = vmatprep.subr.mxu0 0.0
    %1329 = vmatpush1.msra.mxu0 0.0
    %1330 = vmatprep.subr.mxu0 0.0
    %1331 = vmatpush1.msra.mxu0 0.0
    %1332 = vmatprep.mubr.f32.mxu0 0.0
    %v1333 = vand.u32 %v697, 4294901760
    %1334 = vmatmul.mubr.f32.gmra.mrb[0].mxu0 %v1333
    %v1335 = vpop.f32.mrb[0].mxu0
    %v1336 = vadd.f32 %v1249, %v1335
    %v1337 = vpop.f32.mrb[0].mxu0
    %1338 = vdwg.mxu0
    %v1339 = vrsqrt.pop %v1336
    %v1340 = vmul.f32 %v696, %v1339
    %1341 = vst [vmem:[#allocation7] sm:$0xf] %v1340
    // Predicated region
    $region18: #{tpu_custom_call.1} parent=1 // pred_check
      _
    $region19: #{tpu_custom_call.1} parent=1 // pred_check_branch
      %1343 = sbr.rel (0) target = $region21
    $region20: #{tpu_custom_call.1} parent=1 // pred_region
      %s1345 = ssub.s32 64, 64
      %1346 = vsyncadd [#allocation4], %s1345
      %s1348 = sshll.u32 [#allocation7], 4
      %s1349 = int_to_ptr.vmem [resolvable:$true] %s1348
      %1351 = dma.vmem_to_hbm [thread:$0]  %s1349, 64, %s2, [#allocation4]
    $region21: #{tpu_custom_call.1} parent=1 // pred_fallthru
      _
    // Predicated region
    $region22: #{tpu_custom_call.1} parent=1 // pred_check
      _
    $region23: #{tpu_custom_call.1} parent=1 // pred_check_branch
      %1353 = sbr.rel (0) target = $region25
    $region24: #{tpu_custom_call.1} parent=1 // pred_region
      %1354 = dma.done [#allocation4], 64
    $region25: #{tpu_custom_call.1} parent=1 // pred_fallthru
      _
    %1355 = vsyncpa [#allocation3], 1
    %1356 = vsyncpa [#allocation6], 1
    %1357 = vsyncpa [#allocation4], 1

</llo_original>
